<compile_context>
chip_gen: v7x
topology: tpu7x:2x2x1
jax: 0.10.0
libtpu: 0.0.40
codegen_flags: <defaults>
</compile_context>

<pallas_src>
import functools

import jax
import jax.numpy as jnp
from jax import lax
from jax.experimental import pallas as pl
from jax.experimental.pallas import tpu as pltpu


# ----------------------------- chip detection -------------------------------

def _device_kind() -> str:
    try:
        return jax.devices()[0].device_kind.lower()
    except Exception:
        return ""


def _is_v7x() -> bool:
    kind = _device_kind()
    return ("7x" in kind) or ("v7" in kind)


def _num_tensorcores() -> int:
    # v7x exposes 2 TensorCores per chip (grid sharded via "parallel" axes);
    # v5e / v6e have a single TensorCore.
    return 2 if _is_v7x() else 1


def _vmem_capacity_bytes() -> int:
    try:
        info = pltpu.get_tpu_info()
        v = getattr(info, "vmem_capacity_bytes", None)
        if v:
            return int(v)
    except Exception:
        pass
    return (64 << 20) if _is_v7x() else (128 << 20)


def _has_bf16_vpu() -> bool:
    kind = _device_kind()
    # v5e and older lack a bf16 VALU; keep the final multiply in f32 there.
    return not any(tag in kind for tag in ("v2", "v3", "v4", "v5"))


# --------------------------------- kernel -----------------------------------

def _channel_attention_kernel(x_ref, w1t_ref, w2t_ref, o_ref, *,
                              hw_true, mul_in_f32):
    # x_ref:   (Bt, C, HWp)  block of batch elements (HWp = padded H*W)
    # w1t_ref: (C, Cr)       first 1x1 conv weight, transposed (f32)
    # w2t_ref: (Cr, C)       second 1x1 conv weight, transposed (f32)
    x = x_ref[...]                                   # input dtype, no f32 copy
    bt = x.shape[0]
    hwp = x.shape[-1]

    # Global average pool: f32 accumulation; zero padding does not change the
    # sum, divide by the true spatial size.
    avg = jnp.sum(x, axis=-1, dtype=jnp.float32) * (1.0 / hw_true)     # (Bt, C)

    # Global max pool. Only the trailing <128-lane chunk can contain padding,
    # so mask just that chunk with a (1,1,L) lane mask (no block-sized iota).
    if hwp == hw_true:
        mx = jnp.max(x, axis=-1).astype(jnp.float32)
    else:
        hw_aligned = (hw_true // 128) * 128
        tail_len = hwp - hw_aligned
        lane = lax.broadcasted_iota(jnp.int32, (1, 1, tail_len), 2)
        neg_inf = jnp.asarray(-jnp.inf, dtype=x.dtype)
        tail = jnp.where(lane < (hw_true - hw_aligned),
                         x[:, :, hw_aligned:], neg_inf)
        mx = jnp.max(tail, axis=-1)
        if hw_aligned > 0:
            mx = jnp.maximum(jnp.max(x[:, :, :hw_aligned], axis=-1), mx)
        mx = mx.astype(jnp.float32)                                    # (Bt, C)

    # Fused FC: run avg and max through the shared MLP in one matmul pair.
    p = jnp.concatenate([avg, mx], axis=0)                             # (2*Bt, C)
    h = jnp.maximum(
        jnp.dot(p, w1t_ref[...], preferred_element_type=jnp.float32), 0.0
    )                                                                  # (2*Bt, Cr)
    g2 = jnp.dot(h, w2t_ref[...], preferred_element_type=jnp.float32)  # (2*Bt, C)

    gate = g2[:bt] + g2[bt:]                                           # (Bt, C)
    scale = 1.0 / (1.0 + jnp.exp(-gate))                               # sigmoid, f32

    if mul_in_f32:
        y = x.astype(jnp.float32) * scale[:, :, None]
    else:
        y = x * scale.astype(x.dtype)[:, :, None]
    o_ref[...] = y.astype(o_ref.dtype)


# -------------------------------- wrapper ------------------------------------

def channel_attention(x_nchw, w1, w2, *, block_batch=None):
    """ChannelAttention forward. x_nchw: (B, C, H, W); w1: (C//r, C); w2: (C, C//r)."""
    B, C, H, W = x_nchw.shape
    HW = H * W
    Cr = w1.shape[0]
    dtype = x_nchw.dtype
    itemsize = jnp.dtype(dtype).itemsize

    # Lane-dense last dim: pad spatial to a multiple of 128.
    HWp = pl.cdiv(HW, 128) * 128
    x3 = x_nchw.reshape(B, C, HW)
    if HWp != HW:
        x3 = jnp.pad(x3, ((0, 0), (0, 0), (0, HWp - HW)))

    # Weights: pre-transposed, f32, VMEM-resident via constant index maps.
    w1t = jnp.transpose(w1).astype(jnp.float32)   # (C, Cr)
    w2t = jnp.transpose(w2).astype(jnp.float32)   # (Cr, C)
    weight_bytes = (w1t.size + w2t.size) * 4

    n_tc = _num_tensorcores()
    vmem_phys = _vmem_capacity_bytes()
    # Headroom for compiler scratch: ~52 MiB cap on 64-MiB parts (v7x),
    # ~100 MiB cap on 128-MiB parts (v5e/v6e).
    vmem_cap = (52 << 20) if vmem_phys <= (64 << 20) else (100 << 20)

    bytes_per_batch = C * HWp * itemsize

    if block_batch is None:
        # Target multi-MiB blocks (HBM-bound; amortize ~0.35 us/step overhead),
        # while keeping 4x double-buffered footprint + working set + weights
        # under the VMEM cap.
        target_block_bytes = 8 << 20
        budget = max(bytes_per_batch,
                     (vmem_cap - weight_bytes - (4 << 20)) // 5)
        block_budget = min(target_block_bytes, budget)
        nb = max(1, -(-(B * bytes_per_batch) // block_budget))
        if n_tc > 1 and B > 1:
            # Even per-TC split on multi-TC chips (v7x); single-TC chips keep
            # the largest possible block (fewest grid steps).
            nb = max(nb, n_tc)
            nb = -(-nb // n_tc) * n_tc
            nb = min(nb, B)
        Bt = -(-B // nb)
        if nb * Bt - B >= Bt:      # never append a whole block of pure padding
            nb = -(-B // Bt)
    else:
        Bt = int(block_batch)
    Bt = int(max(1, min(Bt, B)))
    nb = -(-B // Bt)
    Bp = nb * Bt
    if Bp != B:
        x3 = jnp.pad(x3, ((0, Bp - B), (0, 0), (0, 0)))

    block_bytes = Bt * C * HWp * itemsize
    # 2x double-buffered input + 2x double-buffered output + ~1 block in-kernel
    # working set (pooling is f32-accumulated, no full f32 copy) + weights.
    vmem_limit = int(min(vmem_cap, 5 * block_bytes + weight_bytes + (4 << 20)))
    vmem_limit = int(max(vmem_limit, 8 << 20))
    # TODO(synk): spatial-tiling (two-pass) fallback when a single batch
    # element's block exceeds the VMEM budget (very large feature maps).

    cost = pl.CostEstimate(
        flops=int(2 * Bp * C * HWp + 2 * 2 * (2 * Bp) * C * Cr),
        transcendentals=int(Bp * C),
        bytes_accessed=int(2 * Bp * C * HWp * itemsize + weight_bytes),
    )

    mul_in_f32 = bool(jnp.dtype(dtype) == jnp.float32) or (not _has_bf16_vpu())
    kernel = functools.partial(_channel_attention_kernel,
                               hw_true=HW, mul_in_f32=mul_in_f32)

    out3 = pl.pallas_call(
        kernel,
        out_shape=jax.ShapeDtypeStruct((Bp, C, HWp), dtype),
        grid_spec=pltpu.PrefetchScalarGridSpec(
            num_scalar_prefetch=0,
            grid=(nb,),
            in_specs=[
                pl.BlockSpec((Bt, C, HWp), lambda b: (b, 0, 0)),   # x block
                pl.BlockSpec((C, Cr), lambda b: (0, 0)),           # w1^T (resident)
                pl.BlockSpec((Cr, C), lambda b: (0, 0)),           # w2^T (resident)
            ],
            out_specs=pl.BlockSpec((Bt, C, HWp), lambda b: (b, 0, 0)),
        ),
        compiler_params=pltpu.CompilerParams(
            dimension_semantics=("parallel",),
            vmem_limit_bytes=vmem_limit,
        ),
        cost_estimate=cost,
    )(x3, w1t, w2t)

    return out3[:B, :, :HW].reshape(B, C, H, W)


# ------------------------------ reference ------------------------------------

def _reference(x, w1, w2):
    avg = jnp.mean(x.astype(jnp.float32), axis=(2, 3))     # (B, C)
    mx = jnp.max(x.astype(jnp.float32), axis=(2, 3))       # (B, C)

    def fc(p):
        h = jnp.maximum(p @ w1.T, 0.0)                     # (B, Cr)
        return h @ w2.T                                    # (B, C)

    gate = jax.nn.sigmoid(fc(avg) + fc(mx))                # (B, C)
    return (x.astype(jnp.float32) * gate[:, :, None, None]).astype(x.dtype)


if __name__ == "__main__":
    key = jax.random.PRNGKey(0)

    # --- Case 1: HW already a multiple of 128 (16x16 = 256) -----------------
    B, C, H, W = 2, 32, 16, 16
    reduction = 16
    Cr = C // reduction

    kx, k1, k2, kx2 = jax.random.split(key, 4)
    x = jax.random.normal(kx, (B, C, H, W), dtype=jnp.float32)
    # Conv2d(C, Cr, 1, bias=False).weight has shape (Cr, C, 1, 1) -> (Cr, C)
    w1 = jax.random.normal(k1, (Cr, C), dtype=jnp.float32) * 0.1
    # Conv2d(Cr, C, 1, bias=False).weight has shape (C, Cr, 1, 1) -> (C, Cr)
    w2 = jax.random.normal(k2, (C, Cr), dtype=jnp.float32) * 0.1

    y = jax.block_until_ready(channel_attention(x, w1, w2))
    y_ref = _reference(x, w1, w2)
    assert y.shape == (B, C, H, W)
    assert jnp.allclose(y, y_ref, atol=1e-5, rtol=1e-5), "mismatch vs reference (case 1)"

    # --- Case 2: non-128-multiple HW (7x7 = 49) + odd batch (exercises both
    # the lane padding/masking path and the batch padding path) --------------
    B2, H2, W2 = 3, 7, 7
    x2 = jax.random.normal(kx2, (B2, C, H2, W2), dtype=jnp.float32)
    y2 = jax.block_until_ready(channel_attention(x2, w1, w2))
    y2_ref = _reference(x2, w1, w2)
    assert y2.shape == (B2, C, H2, W2)
    assert jnp.allclose(y2, y2_ref, atol=1e-5, rtol=1e-5), "mismatch vs reference (case 2)"

    print("KERNEL_OK")
</pallas_src>

<mosaic_0001>
module attributes {stable_mosaic.version = 11 : i64} {
  func.func @_channel_attention_kernel(%arg0: i32, %arg1: memref<2x32x256xf32, #tpu.memory_space<vmem>>, %arg2: memref<32x2xf32, #tpu.memory_space<vmem>>, %arg3: memref<2x32xf32, #tpu.memory_space<vmem>>, %arg4: memref<2x32x256xf32, #tpu.memory_space<vmem>>) attributes {dimension_semantics = [#tpu.dimension_semantics<parallel>], iteration_bounds = array<i64: 1>, scalar_prefetch = 0 : i64, scratch_operands = 0 : i64, tpu.core_type = #tpu.core_type<tc>, window_params = [{transform_indices = @transform_0, window_bounds = array<i64: 2, 32, 256>}, {pipeline_mode = #tpu.pipeline_mode<synchronous>, transform_indices = @transform_1, window_bounds = array<i64: 32, 2>}, {pipeline_mode = #tpu.pipeline_mode<synchronous>, transform_indices = @transform_2, window_bounds = array<i64: 2, 32>}, {transform_indices = @transform_3, window_bounds = array<i64: 2, 32, 256>}]} {
    %c0 = arith.constant 0 : index
    %c0_0 = arith.constant 0 : index
    %c0_1 = arith.constant 0 : index
    %0 = vector.load %arg1[%c0, %c0_0, %c0_1] : memref<2x32x256xf32, #tpu.memory_space<vmem>>, vector<2x32x256xf32>
    %cst = arith.constant dense<0.000000e+00> : vector<2x32xf32>
    %1 = vector.multi_reduction <add>, %0, %cst [2] : vector<2x32x256xf32> to vector<2x32xf32>
    %cst_2 = arith.constant 3.906250e-03 : f32
    %2 = vector.broadcast %cst_2 : f32 to vector<2x32xf32>
    %3 = arith.mulf %1, %2 : vector<2x32xf32>
    %cst_3 = arith.constant dense<0xFF800000> : vector<2x32xf32>
    %4 = vector.multi_reduction <maximumf>, %0, %cst_3 [2] : vector<2x32x256xf32> to vector<2x32xf32>
    %5 = tpu.concatenate %3, %4 in 0 : vector<2x32xf32>, vector<2x32xf32> -> vector<4x32xf32>
    %c0_4 = arith.constant 0 : index
    %c0_5 = arith.constant 0 : index
    %6 = vector.load %arg2[%c0_4, %c0_5] : memref<32x2xf32, #tpu.memory_space<vmem>>, vector<32x2xf32>
    %cst_6 = arith.constant dense<0.000000e+00> : vector<4x2xf32>
    %7 = tpu.matmul %5, %6, %cst_6 {dimension_numbers = #tpu.dot_dimension_numbers<[1], [0], [0], [1], [0, 0, 1, 1], [], []>} : vector<4x32xf32>, vector<32x2xf32>, vector<4x2xf32> -> vector<4x2xf32>
    %cst_7 = arith.constant 0.000000e+00 : f32
    %8 = vector.broadcast %cst_7 : f32 to vector<4x2xf32>
    %9 = arith.maximumf %7, %8 : vector<4x2xf32>
    %c0_8 = arith.constant 0 : index
    %c0_9 = arith.constant 0 : index
    %10 = vector.load %arg3[%c0_8, %c0_9] : memref<2x32xf32, #tpu.memory_space<vmem>>, vector<2x32xf32>
    %cst_10 = arith.constant dense<0.000000e+00> : vector<4x32xf32>
    %11 = tpu.matmul %9, %10, %cst_10 {dimension_numbers = #tpu.dot_dimension_numbers<[1], [0], [0], [1], [0, 0, 1, 1], [], []>} : vector<4x2xf32>, vector<2x32xf32>, vector<4x32xf32> -> vector<4x32xf32>
    %12 = vector.extract_strided_slice %11 {offsets = [0, 0], sizes = [2, 32], strides = [1, 1]} : vector<4x32xf32> to vector<2x32xf32>
    %13 = vector.extract_strided_slice %11 {offsets = [2, 0], sizes = [2, 32], strides = [1, 1]} : vector<4x32xf32> to vector<2x32xf32>
    %14 = arith.addf %12, %13 : vector<2x32xf32>
    %cst_11 = arith.constant 0.000000e+00 : f32
    %15 = vector.broadcast %cst_11 : f32 to vector<2x32xf32>
    %16 = arith.subf %15, %14 : vector<2x32xf32>
    %17 = math.exp %16 : vector<2x32xf32>
    %cst_12 = arith.constant 1.000000e+00 : f32
    %18 = vector.broadcast %cst_12 : f32 to vector<2x32xf32>
    %19 = arith.addf %18, %17 : vector<2x32xf32>
    %cst_13 = arith.constant 1.000000e+00 : f32
    %20 = vector.broadcast %cst_13 : f32 to vector<2x32xf32>
    %21 = arith.divf %20, %19 : vector<2x32xf32>
    %22 = vector.shape_cast %21 : vector<2x32xf32> to vector<2x32x1xf32>
    %23 = vector.broadcast %22 : vector<2x32x1xf32> to vector<2x32x256xf32>
    %24 = arith.mulf %0, %23 : vector<2x32x256xf32>
    %c0_14 = arith.constant 0 : index
    %c0_15 = arith.constant 0 : index
    %c0_16 = arith.constant 0 : index
    %25 = vector.load %arg4[%c0_14, %c0_15, %c0_16] : memref<2x32x256xf32, #tpu.memory_space<vmem>>, vector<2x32x256xf32>
    tpu.vector_store %arg4[%c0_14, %c0_15, %c0_16], %24 {strides = array<i32>} : memref<2x32x256xf32, #tpu.memory_space<vmem>>, vector<2x32x256xf32>,
    return
  }
  func.func @transform_0(%arg0: i32) -> (i32, i32, i32) {
    %c0_i32 = arith.constant 0 : i32
    %c0_i32_0 = arith.constant 0 : i32
    %c0_i32_1 = arith.constant 0 : i32
    return %arg0, %c0_i32, %c0_i32_0 : i32, i32, i32
  }
  func.func @transform_1(%arg0: i32) -> (i32, i32) {
    %c0_i32 = arith.constant 0 : i32
    %c0_i32_0 = arith.constant 0 : i32
    %c0_i32_1 = arith.constant 0 : i32
    return %c0_i32, %c0_i32_0 : i32, i32
  }
  func.func @transform_2(%arg0: i32) -> (i32, i32) {
    %c0_i32 = arith.constant 0 : i32
    %c0_i32_0 = arith.constant 0 : i32
    %c0_i32_1 = arith.constant 0 : i32
    return %c0_i32, %c0_i32_0 : i32, i32
  }
  func.func @transform_3(%arg0: i32) -> (i32, i32, i32) {
    %c0_i32 = arith.constant 0 : i32
    %c0_i32_0 = arith.constant 0 : i32
    %c0_i32_1 = arith.constant 0 : i32
    return %arg0, %c0_i32, %c0_i32_0 : i32, i32, i32
  }
}

</mosaic_0001>

<llo_original>
// kernel: tpu_custom_call.1
$region0: #{tpu_custom_call.1}
  #allocation0 [shape = 'u32[]', space=smem, size = 0x4, offset = 0x4, fixed_abs, tag = 'smem constant byte address 0x4 - core index']
  #allocation1 [shape = 'u32[144,128]{1,0:T(1,128)}', space=vmem, size = 0x12000, scoped, tag = 'internal scratch']
  %s0 = inlined_call_operand.hbm [shape: f32[2,32,256], index: 0, kind: input, shape index: {}]
  %s1 = inlined_call_operand.vmem [shape: f32[32,2], index: 1, kind: input, shape index: {}]
  %s2 = inlined_call_operand.vmem [shape: f32[2,32], index: 2, kind: input, shape index: {}]
  %s3 = inlined_call_operand.hbm [shape: f32[2,32,256], index: 3, kind: output, shape index: {}]
  %s4 = sld [smem:[#allocation0]]
  $region26: #{tpu_custom_call.1} parent=0
    _
  %s6 = ssub.s32 1, %s4
  %s7 = scalar_select 0, %s6, %s4
  $region1: #{tpu_custom_call.1} parent=0
    #allocation2 [shape = 'u8[65536]{0}', space=vmem, size = 0x10000, scoped, tag = 'input window, operand 0, single buffered']
    #allocation3 [shape = 's32[1]{0}', space=sflag, size = 0x4, scoped, tag = 'scoped memory for tpu_custom_call.1']
    #allocation4 [shape = 's32[1]{0}', space=sflag, size = 0x4, scoped, tag = 'scoped memory for tpu_custom_call.1']
    #allocation5 [shape = 'u8[65536]{0}', space=vmem, size = 0x10000, scoped, tag = 'output window, operand 0, single buffered']
    %8 = vsyncpa [#allocation3], 0
    %9 = vsyncpa [#allocation4], 0
    // Predicated region
    $region2: #{tpu_custom_call.1} parent=1 // pred_check
      _
    $region3: #{tpu_custom_call.1} parent=1 // pred_check_branch
      %11 = sbr.rel (0) target = $region5
    $region4: #{tpu_custom_call.1} parent=1 // pred_region
      %s13 = ssub.s32 2048, 2048
      %14 = vsyncadd [#allocation3], %s13
      %s15 = sshll.u32 [#allocation2], 4
      %s16 = int_to_ptr.vmem [resolvable:$true] %s15
      %21 = dma.hbm_to_vmem [thread:$0]  %s0, 2048, %s16, [#allocation3], 256, 256, 16
    $region5: #{tpu_custom_call.1} parent=1 // pred_fallthru
      _
    // Predicated region
    $region6: #{tpu_custom_call.1} parent=1 // pred_check
      _
    $region7: #{tpu_custom_call.1} parent=1 // pred_check_branch
      %23 = sbr.rel (0) target = $region9
    $region8: #{tpu_custom_call.1} parent=1 // pred_region
      _
    $region9: #{tpu_custom_call.1} parent=1 // pred_fallthru
      _
    // Predicated region
    $region10: #{tpu_custom_call.1} parent=1 // pred_check
      _
    $region11: #{tpu_custom_call.1} parent=1 // pred_check_branch
      %25 = sbr.rel (0) target = $region13
    $region12: #{tpu_custom_call.1} parent=1 // pred_region
      _
    $region13: #{tpu_custom_call.1} parent=1 // pred_fallthru
      _
    // Predicated region
    $region14: #{tpu_custom_call.1} parent=1 // pred_check
      _
    $region15: #{tpu_custom_call.1} parent=1 // pred_check_branch
      %27 = sbr.rel (0) target = $region17
    $region16: #{tpu_custom_call.1} parent=1 // pred_region
      %28 = dma.done [#allocation3], 2048
    $region17: #{tpu_custom_call.1} parent=1 // pred_fallthru
      _
    %v29 = vld [vmem:[#allocation2] sm:$0xff]
    %v30 = vld [vmem:[#allocation2 + $0x8] sm:$0xff]
    %v31 = vld [vmem:[#allocation2 + $0x10] sm:$0xff]
    %v32 = vld [vmem:[#allocation2 + $0x18] sm:$0xff]
    %v33 = vld [vmem:[#allocation2 + $0x20] sm:$0xff]
    %v34 = vld [vmem:[#allocation2 + $0x28] sm:$0xff]
    %v35 = vld [vmem:[#allocation2 + $0x30] sm:$0xff]
    %v36 = vld [vmem:[#allocation2 + $0x38] sm:$0xff]
    %v37 = vld [vmem:[#allocation2 + $0x40] sm:$0xff]
    %v38 = vld [vmem:[#allocation2 + $0x48] sm:$0xff]
    %v39 = vld [vmem:[#allocation2 + $0x50] sm:$0xff]
    %v40 = vld [vmem:[#allocation2 + $0x58] sm:$0xff]
    %v41 = vld [vmem:[#allocation2 + $0x60] sm:$0xff]
    %v42 = vld [vmem:[#allocation2 + $0x68] sm:$0xff]
    %v43 = vld [vmem:[#allocation2 + $0x70] sm:$0xff]
    %v44 = vld [vmem:[#allocation2 + $0x78] sm:$0xff]
    %v45 = vadd.f32 %v29, %v30
    %46 = vadd.xlane.f32.xlu0 %v45
    %v47 = vpop.xlane.xlu0 %46
    %v48 = vadd.f32 %v31, %v32
    %49 = vadd.xlane.f32.xlu0 %v48
    %v50 = vpop.xlane.xlu0 %49
    %v51 = vadd.f32 %v33, %v34
    %52 = vadd.xlane.f32.xlu0 %v51
    %v53 = vpop.xlane.xlu0 %52
    %v54 = vadd.f32 %v35, %v36
    %55 = vadd.xlane.f32.xlu0 %v54
    %v56 = vpop.xlane.xlu0 %55
    %v57 = vadd.f32 %v37, %v38
    %58 = vadd.xlane.f32.xlu0 %v57
    %v59 = vpop.xlane.xlu0 %58
    %v60 = vadd.f32 %v39, %v40
    %61 = vadd.xlane.f32.xlu0 %v60
    %v62 = vpop.xlane.xlu0 %61
    %v63 = vadd.f32 %v41, %v42
    %64 = vadd.xlane.f32.xlu0 %v63
    %v65 = vpop.xlane.xlu0 %64
    %v66 = vadd.f32 %v43, %v44
    %67 = vadd.xlane.f32.xlu0 %v66
    %v68 = vpop.xlane.xlu0 %67
    %v69 = vmul.f32 %v47, 0.00390625
    %v70 = vmul.f32 %v50, 0.00390625
    %v71 = vmul.f32 %v53, 0.00390625
    %v72 = vmul.f32 %v56, 0.00390625
    %v73 = vmul.f32 %v59, 0.00390625
    %v74 = vmul.f32 %v62, 0.00390625
    %v75 = vmul.f32 %v65, 0.00390625
    %v76 = vmul.f32 %v68, 0.00390625
    %v77 = vmax.f32 %v29, %v30
    %78 = vmax.xlane.f32.xlu0 %v77
    %v79 = vpop.xlane.xlu0 %78
    %v80 = vmax.f32 %v31, %v32
    %81 = vmax.xlane.f32.xlu0 %v80
    %v82 = vpop.xlane.xlu0 %81
    %v83 = vmax.f32 %v33, %v34
    %84 = vmax.xlane.f32.xlu0 %v83
    %v85 = vpop.xlane.xlu0 %84
    %v86 = vmax.f32 %v35, %v36
    %87 = vmax.xlane.f32.xlu0 %v86
    %v88 = vpop.xlane.xlu0 %87
    %v89 = vmax.f32 %v37, %v38
    %90 = vmax.xlane.f32.xlu0 %v89
    %v91 = vpop.xlane.xlu0 %90
    %v92 = vmax.f32 %v39, %v40
    %93 = vmax.xlane.f32.xlu0 %v92
    %v94 = vpop.xlane.xlu0 %93
    %v95 = vmax.f32 %v41, %v42
    %96 = vmax.xlane.f32.xlu0 %v95
    %v97 = vpop.xlane.xlu0 %96
    %v98 = vmax.f32 %v43, %v44
    %99 = vmax.xlane.f32.xlu0 %v98
    %v100 = vpop.xlane.xlu0 %99
    %v109 = vlaneseq
    %v110 = vand.u32 %v109, 127
    %v111 = vlaneseq
    %v112 = vshrl.u32 %v111, 7
    %v113 = vsub.s32 %v110, %v112
    %v114 = vrot.slane %v69, %v113
    %v115 = vadd.s32 %v110, 4294967288
    %v116 = vlaneseq
    %v117 = vshrl.u32 %v116, 7
    %v118 = vsub.s32 %v115, %v117
    %v119 = vrot.slane %v70, %v118
    %vm120 = vcmask 130112
    %v121 = vsel %vm120, %v119, %v114
    %v122 = vadd.s32 %v110, 4294967280
    %v123 = vlaneseq
    %v124 = vshrl.u32 %v123, 7
    %v125 = vsub.s32 %v122, %v124
    %v126 = vrot.slane %v71, %v125
    %vm127 = vcmask 195712
    %v128 = vsel %vm127, %v126, %v121
    %v129 = vadd.s32 %v110, 4294967272
    %v130 = vlaneseq
    %v131 = vshrl.u32 %v130, 7
    %v132 = vsub.s32 %v129, %v131
    %v133 = vrot.slane %v72, %v132
    %vm134 = vcmask 261312
    %v135 = vsel %vm134, %v133, %v128
    %v136 = vlaneseq
    %v137 = vshrl.u32 %v136, 7
    %v138 = vsub.s32 %v110, %v137
    %v139 = vrot.slane %v73, %v138
    %v140 = vlaneseq
    %v141 = vshrl.u32 %v140, 7
    %v142 = vsub.s32 %v115, %v141
    %v143 = vrot.slane %v74, %v142
    %v144 = vsel %vm120, %v143, %v139
    %v145 = vlaneseq
    %v146 = vshrl.u32 %v145, 7
    %v147 = vsub.s32 %v122, %v146
    %v148 = vrot.slane %v75, %v147
    %v149 = vsel %vm127, %v148, %v144
    %v150 = vlaneseq
    %v151 = vshrl.u32 %v150, 7
    %v152 = vsub.s32 %v129, %v151
    %v153 = vrot.slane %v76, %v152
    %v154 = vsel %vm134, %v153, %v149
    %vm155 = vcmask 1041409
    %v156 = vsel %vm155, %v154, %v135
    %v166 = vlaneseq
    %v167 = vshrl.u32 %v166, 7
    %v168 = vsub.s32 %v110, %v167
    %v169 = vrot.slane %v79, %v168
    %v170 = vlaneseq
    %v171 = vshrl.u32 %v170, 7
    %v172 = vsub.s32 %v115, %v171
    %v173 = vrot.slane %v82, %v172
    %v174 = vsel %vm120, %v173, %v169
    %v175 = vlaneseq
    %v176 = vshrl.u32 %v175, 7
    %v177 = vsub.s32 %v122, %v176
    %v178 = vrot.slane %v85, %v177
    %v179 = vsel %vm127, %v178, %v174
    %v180 = vlaneseq
    %v181 = vshrl.u32 %v180, 7
    %v182 = vsub.s32 %v129, %v181
    %v183 = vrot.slane %v88, %v182
    %v184 = vsel %vm134, %v183, %v179
    %v185 = vlaneseq
    %v186 = vshrl.u32 %v185, 7
    %v187 = vsub.s32 %v110, %v186
    %v188 = vrot.slane %v91, %v187
    %v189 = vlaneseq
    %v190 = vshrl.u32 %v189, 7
    %v191 = vsub.s32 %v115, %v190
    %v192 = vrot.slane %v94, %v191
    %v193 = vsel %vm120, %v192, %v188
    %v194 = vlaneseq
    %v195 = vshrl.u32 %v194, 7
    %v196 = vsub.s32 %v122, %v195
    %v197 = vrot.slane %v97, %v196
    %v198 = vsel %vm127, %v197, %v193
    %v199 = vlaneseq
    %v200 = vshrl.u32 %v199, 7
    %v201 = vsub.s32 %v129, %v200
    %v202 = vrot.slane %v100, %v201
    %v203 = vsel %vm134, %v202, %v198
    %vm204 = vcmask 1043459
    %v205 = vsel %vm204, %v203, %v184
    %vm207 = vcmask 1041408
    %v208 = vsel %vm207, %v156, %v205
    %v209 = vld [vmem:[%s1] sm:$0xff]
    %v210 = vld [vmem:[%s1 + $0x8] sm:$0xff]
    %v211 = vld [vmem:[%s1 + $0x10] sm:$0xff]
    %v212 = vld [vmem:[%s1 + $0x18] sm:$0xff]
    %vm213 = vcmask 261120
    %v215 = vsel %vm213, %v208, 0
    %217 = vmatprep.subr.mxu0 0.0
    %218 = vmatpush1.msra.mxu0 %v209
    %219 = vmatprep.subr.mxu0 0.0
    %220 = vmatpush1.msra.mxu0 %v210
    %221 = vmatprep.subr.mxu0 0.0
    %222 = vmatpush1.msra.mxu0 %v211
    %223 = vmatprep.subr.mxu0 0.0
    %224 = vmatpush1.msra.mxu0 %v212
    %225 = vmatprep.subr.mxu0 0.0
    %226 = vmatpush1.msra.mxu0 0.0
    %227 = vmatprep.subr.mxu0 0.0
    %228 = vmatpush1.msra.mxu0 0.0
    %229 = vmatprep.subr.mxu0 0.0
    %230 = vmatpush1.msra.mxu0 0.0
    %231 = vmatprep.subr.mxu0 0.0
    %232 = vmatpush1.msra.mxu0 0.0
    %233 = vmatprep.subr.mxu0 0.0
    %234 = vmatpush1.msra.mxu0 0.0
    %235 = vmatprep.subr.mxu0 0.0
    %236 = vmatpush1.msra.mxu0 0.0
    %237 = vmatprep.subr.mxu0 0.0
    %238 = vmatpush1.msra.mxu0 0.0
    %239 = vmatprep.subr.mxu0 0.0
    %240 = vmatpush1.msra.mxu0 0.0
    %241 = vmatprep.subr.mxu0 0.0
    %242 = vmatpush1.msra.mxu0 0.0
    %243 = vmatprep.subr.mxu0 0.0
    %244 = vmatpush1.msra.mxu0 0.0
    %245 = vmatprep.subr.mxu0 0.0
    %246 = vmatpush1.msra.mxu0 0.0
    %247 = vmatprep.subr.mxu0 0.0
    %248 = vmatpush1.msra.mxu0 0.0
    %249 = vmatprep.subr.mxu0 0.0
    %250 = vmatpush1.msra.mxu0 0.0
    %251 = vmatprep.subr.mxu0 0.0
    %252 = vmatpush1.msra.mxu0 0.0
    %253 = vmatprep.subr.mxu0 0.0
    %254 = vmatpush1.msra.mxu0 0.0
    %255 = vmatprep.subr.mxu0 0.0
    %256 = vmatpush1.msra.mxu0 0.0
    %257 = vmatprep.subr.mxu0 0.0
    %258 = vmatpush1.msra.mxu0 0.0
    %259 = vmatprep.subr.mxu0 0.0
    %260 = vmatpush1.msra.mxu0 0.0
    %261 = vmatprep.subr.mxu0 0.0
    %262 = vmatpush1.msra.mxu0 0.0
    %263 = vmatprep.subr.mxu0 0.0
    %264 = vmatpush1.msra.mxu0 0.0
    %265 = vmatprep.subr.mxu0 0.0
    %266 = vmatpush1.msra.mxu0 0.0
    %267 = vmatprep.subr.mxu0 0.0
    %268 = vmatpush1.msra.mxu0 0.0
    %269 = vmatprep.subr.mxu0 0.0
    %270 = vmatpush1.msra.mxu0 0.0
    %271 = vmatprep.subr.mxu0 0.0
    %272 = vmatpush1.msra.mxu0 0.0
    %273 = vmatprep.subr.mxu0 0.0
    %274 = vmatpush1.msra.mxu0 0.0
    %275 = vmatprep.subr.mxu0 0.0
    %276 = vmatpush1.msra.mxu0 0.0
    %277 = vmatprep.subr.mxu0 0.0
    %278 = vmatpush1.msra.mxu0 0.0
    %279 = vmatprep.subr.mxu0 0.0
    %280 = vmatpush1.msra.mxu0 0.0
    %281 = vmatprep.mubr.f32.mxu0 0.0
    %282 = vmatmul.mubr.f32.gmra.mrb[0].mxu0 %v215
    %v283 = vpop.f32.mrb[0].mxu0
    %v284 = vadd.f32 0.0, %v283
    %v285 = vpop.f32.mrb[0].mxu0
    %286 = vdwg.mxu0
    %v287 = vmax.f32 %v284, 0.0
    %v288 = vld [vmem:[%s2] sm:$0x3]
    %vm289 = vcmask 15360
    %v291 = vsel %vm289, %v287, 0
    %v294 = vsel %vm207, %v288, 0
    %296 = vmatprep.subr.mxu0 0.0
    %297 = vmatpush1.msra.mxu0 %v294
    %298 = vmatprep.subr.mxu0 0.0
    %299 = vmatpush1.msra.mxu0 0.0
    %300 = vmatprep.subr.mxu0 0.0
    %301 = vmatpush1.msra.mxu0 0.0
    %302 = vmatprep.subr.mxu0 0.0
    %303 = vmatpush1.msra.mxu0 0.0
    %304 = vmatprep.subr.mxu0 0.0
    %305 = vmatpush1.msra.mxu0 0.0
    %306 = vmatprep.subr.mxu0 0.0
    %307 = vmatpush1.msra.mxu0 0.0
    %308 = vmatprep.subr.mxu0 0.0
    %309 = vmatpush1.msra.mxu0 0.0
    %310 = vmatprep.subr.mxu0 0.0
    %311 = vmatpush1.msra.mxu0 0.0
    %312 = vmatprep.subr.mxu0 0.0
    %313 = vmatpush1.msra.mxu0 0.0
    %314 = vmatprep.subr.mxu0 0.0
    %315 = vmatpush1.msra.mxu0 0.0
    %316 = vmatprep.subr.mxu0 0.0
    %317 = vmatpush1.msra.mxu0 0.0
    %318 = vmatprep.subr.mxu0 0.0
    %319 = vmatpush1.msra.mxu0 0.0
    %320 = vmatprep.subr.mxu0 0.0
    %321 = vmatpush1.msra.mxu0 0.0
    %322 = vmatprep.subr.mxu0 0.0
    %323 = vmatpush1.msra.mxu0 0.0
    %324 = vmatprep.subr.mxu0 0.0
    %325 = vmatpush1.msra.mxu0 0.0
    %326 = vmatprep.subr.mxu0 0.0
    %327 = vmatpush1.msra.mxu0 0.0
    %328 = vmatprep.subr.mxu0 0.0
    %329 = vmatpush1.msra.mxu0 0.0
    %330 = vmatprep.subr.mxu0 0.0
    %331 = vmatpush1.msra.mxu0 0.0
    %332 = vmatprep.subr.mxu0 0.0
    %333 = vmatpush1.msra.mxu0 0.0
    %334 = vmatprep.subr.mxu0 0.0
    %335 = vmatpush1.msra.mxu0 0.0
    %336 = vmatprep.subr.mxu0 0.0
    %337 = vmatpush1.msra.mxu0 0.0
    %338 = vmatprep.subr.mxu0 0.0
    %339 = vmatpush1.msra.mxu0 0.0
    %340 = vmatprep.subr.mxu0 0.0
    %341 = vmatpush1.msra.mxu0 0.0
    %342 = vmatprep.subr.mxu0 0.0
    %343 = vmatpush1.msra.mxu0 0.0
    %344 = vmatprep.subr.mxu0 0.0
    %345 = vmatpush1.msra.mxu0 0.0
    %346 = vmatprep.subr.mxu0 0.0
    %347 = vmatpush1.msra.mxu0 0.0
    %348 = vmatprep.subr.mxu0 0.0
    %349 = vmatpush1.msra.mxu0 0.0
    %350 = vmatprep.subr.mxu0 0.0
    %351 = vmatpush1.msra.mxu0 0.0
    %352 = vmatprep.subr.mxu0 0.0
    %353 = vmatpush1.msra.mxu0 0.0
    %354 = vmatprep.subr.mxu0 0.0
    %355 = vmatpush1.msra.mxu0 0.0
    %356 = vmatprep.subr.mxu0 0.0
    %357 = vmatpush1.msra.mxu0 0.0
    %358 = vmatprep.subr.mxu0 0.0
    %359 = vmatpush1.msra.mxu0 0.0
    %360 = vmatprep.mubr.f32.mxu0 0.0
    %361 = vmatmul.mubr.f32.gmra.mrb[0].mxu0 %v291
    %v362 = vpop.f32.mrb[0].mxu0
    %v363 = vadd.f32 0.0, %v362
    %v364 = vpop.f32.mrb[0].mxu0
    %365 = vdwg.mxu0
    %v367 = vrot.slane %v363, 2
    %v369 = vadd.f32 %v363, %v367
    %v370 = vsub.f32 0.0, %v369
    %v371 = vmul.f32 %v370, 1.442695
    %v372 = vpow.pop %v371
    %v373 = vadd.f32 %v372, 1.0
    %v374 = vrcp.pop %v373
    %v375 = vmul.f32 1.0, %v374
    %v376 = vlaneseq
    %v377 = vshrl.u32 %v376, 7
    %v378 = vsub.s32 0, %v377
    %v379 = vrot.slane %v375, %v378
    %381 = vbcast.lane.b32.xlu0 %v379, 256
    %v382 = vpop.permute.xlu0 %381
    %s384 = sor.u32 256, 8
    %385 = vbcast.lane.b32.xlu0 %v379, %s384
    %v386 = vpop.permute.xlu0 %385
    %s388 = sor.u32 256, 16
    %389 = vbcast.lane.b32.xlu0 %v379, %s388
    %v390 = vpop.permute.xlu0 %389
    %s392 = sor.u32 256, 24
    %393 = vbcast.lane.b32.xlu0 %v379, %s392
    %v394 = vpop.permute.xlu0 %393
    %v395 = vlaneseq
    %v396 = vshrl.u32 %v395, 7
    %v397 = vsub.s32 1, %v396
    %v398 = vrot.slane %v375, %v397
    %400 = vbcast.lane.b32.xlu0 %v398, 256
    %v401 = vpop.permute.xlu0 %400
    %s403 = sor.u32 256, 8
    %404 = vbcast.lane.b32.xlu0 %v398, %s403
    %v405 = vpop.permute.xlu0 %404
    %s407 = sor.u32 256, 16
    %408 = vbcast.lane.b32.xlu0 %v398, %s407
    %v409 = vpop.permute.xlu0 %408
    %s411 = sor.u32 256, 24
    %412 = vbcast.lane.b32.xlu0 %v398, %s411
    %v413 = vpop.permute.xlu0 %412
    %v414 = vmul.f32 %v29, %v382
    %v415 = vmul.f32 %v30, %v382
    %v416 = vmul.f32 %v31, %v386
    %v417 = vmul.f32 %v32, %v386
    %v418 = vmul.f32 %v33, %v390
    %v419 = vmul.f32 %v34, %v390
    %v420 = vmul.f32 %v35, %v394
    %v421 = vmul.f32 %v36, %v394
    %v422 = vmul.f32 %v37, %v401
    %v423 = vmul.f32 %v38, %v401
    %v424 = vmul.f32 %v39, %v405
    %v425 = vmul.f32 %v40, %v405
    %v426 = vmul.f32 %v41, %v409
    %v427 = vmul.f32 %v42, %v409
    %v428 = vmul.f32 %v43, %v413
    %v429 = vmul.f32 %v44, %v413
    %430 = vst [vmem:[#allocation5] sm:$0xff] %v414
    %431 = vst [vmem:[#allocation5 + $0x8] sm:$0xff] %v415
    %432 = vst [vmem:[#allocation5 + $0x10] sm:$0xff] %v416
    %433 = vst [vmem:[#allocation5 + $0x18] sm:$0xff] %v417
    %434 = vst [vmem:[#allocation5 + $0x20] sm:$0xff] %v418
    %435 = vst [vmem:[#allocation5 + $0x28] sm:$0xff] %v419
    %436 = vst [vmem:[#allocation5 + $0x30] sm:$0xff] %v420
    %437 = vst [vmem:[#allocation5 + $0x38] sm:$0xff] %v421
    %438 = vst [vmem:[#allocation5 + $0x40] sm:$0xff] %v422
    %439 = vst [vmem:[#allocation5 + $0x48] sm:$0xff] %v423
    %440 = vst [vmem:[#allocation5 + $0x50] sm:$0xff] %v424
    %441 = vst [vmem:[#allocation5 + $0x58] sm:$0xff] %v425
    %442 = vst [vmem:[#allocation5 + $0x60] sm:$0xff] %v426
    %443 = vst [vmem:[#allocation5 + $0x68] sm:$0xff] %v427
    %444 = vst [vmem:[#allocation5 + $0x70] sm:$0xff] %v428
    %445 = vst [vmem:[#allocation5 + $0x78] sm:$0xff] %v429
    // Predicated region
    $region18: #{tpu_custom_call.1} parent=1 // pred_check
      _
    $region19: #{tpu_custom_call.1} parent=1 // pred_check_branch
      %447 = sbr.rel (0) target = $region21
    $region20: #{tpu_custom_call.1} parent=1 // pred_region
      %s449 = ssub.s32 2048, 2048
      %450 = vsyncadd [#allocation4], %s449
      %s451 = sshll.u32 [#allocation5], 4
      %s452 = int_to_ptr.vmem [resolvable:$true] %s451
      %457 = dma.vmem_to_hbm [thread:$0]  %s452, 2048, %s3, [#allocation4], 256, 256, 16
    $region21: #{tpu_custom_call.1} parent=1 // pred_fallthru
      _
    // Predicated region
    $region22: #{tpu_custom_call.1} parent=1 // pred_check
      _
    $region23: #{tpu_custom_call.1} parent=1 // pred_check_branch
      %459 = sbr.rel (0) target = $region25
    $region24: #{tpu_custom_call.1} parent=1 // pred_region
      %460 = dma.done [#allocation4], 2048
    $region25: #{tpu_custom_call.1} parent=1 // pred_fallthru
      _
    %461 = vsyncpa [#allocation3], 1
    %462 = vsyncpa [#allocation4], 1

</llo_original>
